<compile_context>
chip_gen: v5e
topology: v5e:2x2
jax: 0.10.0
libtpu: 0.0.40
codegen_flags: <defaults>
</compile_context>

<pallas_src>
import functools
import math

import jax
import jax.numpy as jnp
from jax import lax
from jax.experimental import pallas as pl
from jax.experimental.pallas import tpu as pltpu

_TWO_PI = 2.0 * math.pi


def _gfp_kernel(x_ref, w_ref, out_ref, *, emb, row_chunk):
    """One batch tile: out[:, :emb] = sin(2*pi*x*W); out[:, emb:] = cos(2*pi*x*W)."""
    # Fold 2*pi into the small (1, emb) operand once per grid step (review opt #1).
    w2pi = w_ref[...].astype(jnp.float32) * _TWO_PI          # (1, emb)
    n_chunks = out_ref.shape[0] // row_chunk                 # static (block shape)

    def body(c, carry):
        r0 = pl.multiple_of(c * row_chunk, row_chunk)        # sublane-aligned start
        x = x_ref[pl.ds(r0, row_chunk), :].astype(jnp.float32)   # (rc, 1)
        x_proj = x * w2pi                                     # (rc, emb): single VPU bcast-mul
        # Two static half-stores; unmasked vst when emb % 128 == 0 (demo: emb=128).
        out_ref[pl.ds(r0, row_chunk), 0:emb] = jnp.sin(x_proj).astype(out_ref.dtype)
        out_ref[pl.ds(r0, row_chunk), emb:2 * emb] = jnp.cos(x_proj).astype(out_ref.dtype)
        return carry

    # Chunked loop bounds vreg live ranges (x_proj + sin + cos per chunk << 64 vregs).
    lax.fori_loop(0, n_chunks, body, 0, unroll=True)


def _pick_tiles(B, emb, batch_tile):
    """Pick (batch_tile, row_chunk): tb multiple of 8, row_chunk divides tb."""
    if batch_tile is not None:
        tb = max(8, (int(batch_tile) // 8) * 8)
    else:
        tb = min(1024, pl.cdiv(B, 8) * 8)      # amortize per-step overhead for large B
    # Target ~16 f32 vregs per (row_chunk, emb) intermediate: row_chunk*emb <= 16384.
    target = max(8, min(256, (16384 // max(emb, 1)) // 8 * 8))
    row_chunk = tb
    for cand in range(min(target, tb), 7, -8):
        if tb % cand == 0:
            row_chunk = cand
            break
    return tb, row_chunk


def gaussian_fourier_projection(x, W, *, batch_tile=None, out_dtype=None):
    """Pallas GaussianFourierProjection forward.

    x: (B,) or (B, 1) noise levels.
    W: (embedding_size,) fixed Gaussian frequencies (requires_grad=False in PyTorch).
    returns: (B, 2*embedding_size) = [sin(2*pi*x*W), cos(2*pi*x*W)].

    Tip: embedding_size % 128 == 0 makes both half-stores lane-dense (unmasked vst);
    other sizes are correct but use masked partial stores.
    """
    x2 = jnp.asarray(x)
    if x2.ndim == 1:
        x2 = x2[:, None]
    assert x2.ndim == 2 and x2.shape[1] == 1, x2.shape
    B = x2.shape[0]

    w2 = jnp.asarray(W).reshape(1, -1)
    emb = w2.shape[1]
    out_dtype = x2.dtype if out_dtype is None else jnp.dtype(out_dtype)

    tb, row_chunk = _pick_tiles(B, emb, batch_tile)
    grid = (pl.cdiv(B, tb),)                 # ragged last block handled by Pallas masking

    cost = pl.CostEstimate(
        flops=B * emb + emb,                 # w*2pi (emb) + broadcast multiply (B*emb)
        transcendentals=2 * B * emb,         # sin + cos
        bytes_accessed=(x2.dtype.itemsize * B
                        + w2.dtype.itemsize * emb
                        + jnp.dtype(out_dtype).itemsize * B * 2 * emb),
    )

    out = pl.pallas_call(
        functools.partial(_gfp_kernel, emb=emb, row_chunk=row_chunk),
        out_shape=jax.ShapeDtypeStruct((B, 2 * emb), out_dtype),
        grid_spec=pltpu.PrefetchScalarGridSpec(
            num_scalar_prefetch=0,
            grid=grid,
            in_specs=[
                pl.BlockSpec((tb, 1), lambda i: (i, 0)),      # batch tile of x
                pl.BlockSpec((1, emb), lambda i: (0, 0)),     # W resident every step
            ],
            out_specs=pl.BlockSpec((tb, 2 * emb), lambda i: (i, 0)),
        ),
        compiler_params=pltpu.CompilerParams(
            dimension_semantics=("parallel",),   # megacore / dual-TC sharding when grid >= 2
        ),
        cost_estimate=cost,
    )(x2, w2)

    return out


def gfp_reference(x, W):
    """Plain-JAX reference mirroring the PyTorch forward."""
    x2 = jnp.asarray(x)
    if x2.ndim == 1:
        x2 = x2[:, None]
    x_proj = x2 * W[None, :] * _TWO_PI
    return jnp.concatenate([jnp.sin(x_proj), jnp.cos(x_proj)], axis=-1)


if __name__ == "__main__":
    key = jax.random.PRNGKey(0)
    kx, kw = jax.random.split(key)

    batch = 8
    embedding_size = 128     # multiple of 128 -> both output halves are lane-dense
    scale = 1.0

    # x: per-sample noise level (B, 1); W: frozen Gaussian frequencies * scale.
    x = jax.random.normal(kx, (batch, 1), jnp.float32)
    W = jax.random.normal(kw, (embedding_size,), jnp.float32) * scale

    out = gaussian_fourier_projection(x, W)
    out = jax.block_until_ready(out)

    ref = gfp_reference(x, W)
    assert out.shape == (batch, 2 * embedding_size), out.shape
    max_err = float(jnp.max(jnp.abs(out - ref)))
    assert jnp.allclose(out, ref, atol=1e-4, rtol=1e-4), max_err

    print("KERNEL_OK")
</pallas_src>

<mosaic_0001>
module attributes {stable_mosaic.version = 11 : i64} {
  func.func @_gfp_kernel(%arg0: i32, %arg1: memref<8x1xf32, #tpu.memory_space<vmem>>, %arg2: memref<1x128xf32, #tpu.memory_space<vmem>>, %arg3: memref<8x256xf32, #tpu.memory_space<vmem>>) attributes {dimension_semantics = [#tpu.dimension_semantics<parallel>], iteration_bounds = array<i64: 1>, scalar_prefetch = 0 : i64, scratch_operands = 0 : i64, tpu.core_type = #tpu.core_type<tc>, window_params = [{transform_indices = @transform_0, window_bounds = array<i64: 8, 1>}, {pipeline_mode = #tpu.pipeline_mode<synchronous>, transform_indices = @transform_1, window_bounds = array<i64: 1, 128>}, {transform_indices = @transform_2, window_bounds = array<i64: 8, 256>}]} {
    %c0 = arith.constant 0 : index
    %c0_0 = arith.constant 0 : index
    %0 = vector.load %arg2[%c0, %c0_0] : memref<1x128xf32, #tpu.memory_space<vmem>>, vector<1x128xf32>
    %cst = arith.constant 6.28318548 : f32
    %1 = vector.broadcast %cst : f32 to vector<1x128xf32>
    %2 = arith.mulf %0, %1 : vector<1x128xf32>
    %c0_i32 = arith.constant 0 : i32
    %c8_i32 = arith.constant 8 : i32
    %3 = arith.muli %c0_i32, %c8_i32 : i32
    %4 = tpu.assume_multiple %3, 8 : i32
    %5 = arith.index_cast %4 : i32 to index
    %c0_1 = arith.constant 0 : index
    %6 = vector.load %arg1[%5, %c0_1] : memref<8x1xf32, #tpu.memory_space<vmem>>, vector<8x1xf32>
    %7 = vector.broadcast %6 : vector<8x1xf32> to vector<8x128xf32>
    %8 = vector.broadcast %2 : vector<1x128xf32> to vector<8x128xf32>
    %9 = arith.mulf %7, %8 : vector<8x128xf32>
    %10 = math.sin %9 : vector<8x128xf32>
    %11 = arith.index_cast %4 : i32 to index
    %c0_2 = arith.constant 0 : index
    %12 = vector.load %arg3[%11, %c0_2] : memref<8x256xf32, #tpu.memory_space<vmem>>, vector<8x128xf32>
    tpu.vector_store %arg3[%11, %c0_2], %10 {strides = array<i32>} : memref<8x256xf32, #tpu.memory_space<vmem>>, vector<8x128xf32>,
    %13 = math.cos %9 : vector<8x128xf32>
    %14 = arith.index_cast %4 : i32 to index
    %c128 = arith.constant 128 : index
    %15 = vector.load %arg3[%14, %c128] : memref<8x256xf32, #tpu.memory_space<vmem>>, vector<8x128xf32>
    tpu.vector_store %arg3[%14, %c128], %13 {strides = array<i32>} : memref<8x256xf32, #tpu.memory_space<vmem>>, vector<8x128xf32>,
    %c1_i32 = arith.constant 1 : i32
    return
  }
  func.func @transform_0(%arg0: i32) -> (i32, i32) {
    %c0_i32 = arith.constant 0 : i32
    %c0_i32_0 = arith.constant 0 : i32
    return %arg0, %c0_i32 : i32, i32
  }
  func.func @transform_1(%arg0: i32) -> (i32, i32) {
    %c0_i32 = arith.constant 0 : i32
    %c0_i32_0 = arith.constant 0 : i32
    %c0_i32_1 = arith.constant 0 : i32
    return %c0_i32, %c0_i32_0 : i32, i32
  }
  func.func @transform_2(%arg0: i32) -> (i32, i32) {
    %c0_i32 = arith.constant 0 : i32
    %c0_i32_0 = arith.constant 0 : i32
    return %arg0, %c0_i32 : i32, i32
  }
}

</mosaic_0001>

<llo_original>
// kernel: tpu_custom_call.1
$region0: #{tpu_custom_call.1}
  #allocation0 [shape = 'u32[]', space=smem, size = 0x4, offset = 0x4, fixed_abs, tag = 'smem constant byte address 0x4 - core index']
  #allocation1 [shape = 'u32[72,128]{1,0:T(1,128)}', space=vmem, size = 0x9000, scoped, tag = 'internal scratch']
  %s0 = inlined_call_operand.vmem [shape: f32[8,1], index: 0, kind: input, shape index: {}]
  %s1 = inlined_call_operand.vmem [shape: f32[1,128], index: 1, kind: input, shape index: {}]
  %s2 = inlined_call_operand.hbm [shape: f32[8,256], index: 2, kind: output, shape index: {}]
  %s3 = sld [smem:[#allocation0]]
  $region18: #{tpu_custom_call.1} parent=0
    _
  %s5 = ssub.s32 1, %s3
  %s6 = scalar_select 0, %s5, %s3
  $region1: #{tpu_custom_call.1} parent=0
    #allocation2 [shape = 'u8[8192]{0}', space=vmem, size = 0x2000, scoped, tag = 'output window, operand 0, single buffered']
    #allocation3 [shape = 's32[1]{0}', space=sflag, size = 0x4, scoped, tag = 'scoped memory for tpu_custom_call.1']
    %7 = vsyncpa [#allocation3], 0
    // Predicated region
    $region2: #{tpu_custom_call.1} parent=1 // pred_check
      _
    $region3: #{tpu_custom_call.1} parent=1 // pred_check_branch
      %9 = sbr.rel (0) target = $region5
    $region4: #{tpu_custom_call.1} parent=1 // pred_region
      _
    $region5: #{tpu_custom_call.1} parent=1 // pred_fallthru
      _
    // Predicated region
    $region6: #{tpu_custom_call.1} parent=1 // pred_check
      _
    $region7: #{tpu_custom_call.1} parent=1 // pred_check_branch
      %11 = sbr.rel (0) target = $region9
    $region8: #{tpu_custom_call.1} parent=1 // pred_region
      _
    $region9: #{tpu_custom_call.1} parent=1 // pred_fallthru
      _
    %v12 = vld [vmem:[%s1] sm:$0x1]
    %v13 = vmul.f32 %v12, 6.2831855
    %v14 = vld [vmem:[%s0] sm:$0xff]
    %16 = vset.pattern.permute.xlu0 0
    %17 = vperm.xlu0 %16, %v14
    %v18 = vpop.permute.xlu0 %17
    %v21 = vperm.slane %v13, 0
    %v23 = vmul.f32 %v18, %v21
    %v24 = vand.u32 2147483647, %v23
    %vm25 = vcmp.le.f32.partialorder %v24, 0.7853982
    %vm26 = vcmp.lt.s32.totalorder %v23, 0
    %v27 = vand.u32 %v23, 2139095040
    %v28 = vshrl.u32 %v27, 23
    %v29 = vsub.s32 %v28, 127
    %v30 = vand.u32 2147483647, %v23
    %v31 = vand.u32 %v30, 8388607
    %v32 = vor.u32 %v31, 8388608
    %v33 = vsub.s32 0, %v32
    %v34 = vadd.s32 %v29, 1
    %vm35 = vcmp.gt.s32.totalorder %v34, 0
    %v36 = vsel %vm35, %v34, 0
    %v37 = vshrl.u32 %v36, 5
    %v38 = vand.u32 %v36, 31
    %v39 = vsub.s32 32, %v38
    %v40 = vshrl.u32 683565275, %v39
    %v41 = vshll.u32 683565275, %v38
    %v42 = vshrl.u32 2475754826, %v39
    %v43 = vor.u32 %v41, %v42
    %v44 = vshll.u32 2475754826, %v38
    %v45 = vshrl.u32 2131351028, %v39
    %v46 = vor.u32 %v44, %v45
    %v47 = vshll.u32 2131351028, %v38
    %v48 = vshrl.u32 2102212464, %v39
    %v49 = vor.u32 %v47, %v48
    %v50 = vshll.u32 2102212464, %v38
    %v51 = vshrl.u32 920167782, %v39
    %v52 = vor.u32 %v50, %v51
    %v53 = vshll.u32 920167782, %v38
    %v54 = vshrl.u32 1326507024, %v39
    %v55 = vor.u32 %v53, %v54
    %vm56 = vcmp.lt.s32.totalorder %v37, 1
    %vm57 = vcmp.lt.s32.totalorder %v37, 2
    %vm58 = vcmp.lt.s32.totalorder %v37, 3
    %vm59 = vcmp.lt.s32.totalorder %v37, 4
    %v60 = vsel %vm56, %v40, %v43
    %v61 = vsel %vm59, %v49, 2102212464
    %v62 = vsel %vm58, %v46, %v61
    %v63 = vsel %vm57, %v60, %v62
    %v64 = vsel %vm56, %v43, %v46
    %v65 = vsel %vm59, %v52, 920167782
    %v66 = vsel %vm58, %v49, %v65
    %v67 = vsel %vm57, %v64, %v66
    %v68 = vsel %vm56, %v46, %v49
    %v69 = vsel %vm59, %v55, 1326507024
    %v70 = vsel %vm58, %v52, %v69
    %v71 = vsel %vm57, %v68, %v70
    %v72 = vshll.u32 %v32, 8
    %v73 = vand.u32 %v72, 65535
    %v74 = vshrl.u32 %v72, 16
    %v75 = vand.u32 %v71, 65535
    %v76 = vshrl.u32 %v71, 16
    %v77 = vmul.u32 %v73, %v75
    %v78 = vmul.u32 %v73, %v76
    %v79 = vmul.u32 %v74, %v75
    %v80 = vmul.u32 %v74, %v76
    %v81 = vshll.u32 %v78, 16
    %v82 = vshrl.u32 %v78, 16
    %v83 = vshll.u32 %v79, 16
    %v84 = vshrl.u32 %v79, 16
    %vm85 = vc.u32 %v77, %v81
    %v86 = vsel %vm85, 1, 0
    %v87 = vadd.s32 %v77, %v81
    %v88 = vadd.s32 %v80, %v86
    %vm89 = vc.u32 %v87, %v83
    %v90 = vsel %vm89, 1, 0
    %v91 = vadd.s32 %v87, %v83
    %v92 = vadd.s32 %v88, %v90
    %v93 = vadd.s32 %v92, %v82
    %v94 = vadd.s32 %v93, %v84
    %v95 = vand.u32 %v72, 65535
    %v96 = vshrl.u32 %v72, 16
    %v97 = vand.u32 %v67, 65535
    %v98 = vshrl.u32 %v67, 16
    %v99 = vmul.u32 %v95, %v97
    %v100 = vmul.u32 %v95, %v98
    %v101 = vmul.u32 %v96, %v97
    %v102 = vmul.u32 %v96, %v98
    %v103 = vshll.u32 %v100, 16
    %v104 = vshrl.u32 %v100, 16
    %v105 = vshll.u32 %v101, 16
    %v106 = vshrl.u32 %v101, 16
    %vm107 = vc.u32 %v99, %v103
    %v108 = vsel %vm107, 1, 0
    %v109 = vadd.s32 %v99, %v103
    %v110 = vadd.s32 %v102, %v108
    %vm111 = vc.u32 %v109, %v105
    %v112 = vsel %vm111, 1, 0
    %v113 = vadd.s32 %v109, %v105
    %v114 = vadd.s32 %v110, %v112
    %v115 = vadd.s32 %v114, %v104
    %v116 = vadd.s32 %v115, %v106
    %v117 = vmul.u32 %v72, %v63
    %v118 = vadd.s32 %v94, %v113
    %vm119 = vc.u32 %v94, %v113
    %v120 = vadd.s32 %v116, 1
    %v121 = vsel %vm119, %v120, %v116
    %v122 = vadd.s32 %v117, %v121
    %v123 = vadd.s32 %v122, 536870912
    %v124 = vshrl.u32 %v123, 30
    %v125 = vshll.u32 %v124, 30
    %v126 = vsub.s32 %v122, %v125
    %vm127 = vcmp.lt.s32.totalorder %v126, 0
    %v128 = vsub.s32 0, %v126
    %v129 = vsel %vm127, %v128, %v126
    %v130 = vclz %v129
    %v131 = vsub.s32 %v130, 2
    %vm132 = vcmp.gt.s32.totalorder 0, %v131
    %v133 = vsel %vm132, 0, %v131
    %v134 = vsub.s32 32, %v133
    %v135 = vshll.u32 %v126, %v133
    %v136 = vshrl.u32 %v118, %v134
    %v137 = vor.u32 %v135, %v136
    %v138 = vsub.s32 4294967266, %v133
    %v139 = vadd.s32 %v138, 127
    %v140 = vshll.u32 %v139, 23
    %v141 = vor.u32 4788187, %v140
    %v142 = vand.u32 2147483647, %v141
    %v144 = vcvt.s32.f32 %v137
    %v145 = vmul.f32 %v144, %v142
    %v146 = vxor.u32 %v145, 2147483648
    %v147 = vsel %vm26, %v146, %v145
    %v148 = vsub.s32 4, %v124
    %v149 = vsel %vm26, %v148, %v124
    %v150 = vsel %vm25, %v23, %v147
    %v151 = vsel %vm25, 0, %v149
    %v152 = vmul.f32 %v150, %v150
    %v153 = vmul.f32 %v152, -0.001358992
    %v154 = vadd.f32 %v153, 0.041655596
    %v155 = vmul.f32 %v152, %v154
    %v156 = vadd.f32 %v155, -0.4999988
    %v157 = vmul.f32 %v152, %v156
    %v158 = vadd.f32 1.0, %v157
    %v159 = vmul.f32 %v150, %v150
    %v160 = vmul.f32 %v159, -0.00019511016
    %v161 = vadd.f32 %v160, 0.008332121
    %v162 = vmul.f32 %v159, %v161
    %v163 = vadd.f32 %v162, -0.16666654
    %v164 = vmul.f32 %v159, %v163
    %v165 = vadd.f32 %v164, 1.0
    %v166 = vmul.f32 %v165, %v150
    %vm167 = vweird.f32 %v23
    %v168 = vadd.s32 %v151, 3
    %v169 = vand.u32 %v168, 3
    %vm170 = vcmp.lt.s32.totalorder %v169, 2
    %vm171 = vcmp.eq.s32.totalorder %v169, 0
    %v172 = vxor.u32 %v166, 2147483648
    %v173 = vsel %vm171, %v158, %v172
    %vm174 = vcmp.eq.s32.totalorder %v169, 2
    %v175 = vxor.u32 %v158, 2147483648
    %v176 = vsel %vm174, %v175, %v166
    %v177 = vsel %vm170, %v173, %v176
    %v178 = vsel %vm167, nan, %v177
    %s179 = smul.u32 0, 2
    %s180 = smul.addr %s179, 8
    %s181 = scalar_lea.vmem [#allocation2], %s180
    %182 = vst [vmem:[%s181] sm:$0xff] %v178
    %v183 = vand.u32 2147483647, %v23
    %vm184 = vcmp.le.f32.partialorder %v183, 0.7853982
    %vm185 = vcmp.lt.s32.totalorder %v23, 0
    %v186 = vand.u32 %v23, 2139095040
    %v187 = vshrl.u32 %v186, 23
    %v188 = vsub.s32 %v187, 127
    %v189 = vand.u32 2147483647, %v23
    %v190 = vand.u32 %v189, 8388607
    %v191 = vor.u32 %v190, 8388608
    %v192 = vsub.s32 0, %v191
    %v193 = vadd.s32 %v188, 1
    %vm194 = vcmp.gt.s32.totalorder %v193, 0
    %v195 = vsel %vm194, %v193, 0
    %v196 = vshrl.u32 %v195, 5
    %v197 = vand.u32 %v195, 31
    %v198 = vsub.s32 32, %v197
    %v199 = vshrl.u32 683565275, %v198
    %v200 = vshll.u32 683565275, %v197
    %v201 = vshrl.u32 2475754826, %v198
    %v202 = vor.u32 %v200, %v201
    %v203 = vshll.u32 2475754826, %v197
    %v204 = vshrl.u32 2131351028, %v198
    %v205 = vor.u32 %v203, %v204
    %v206 = vshll.u32 2131351028, %v197
    %v207 = vshrl.u32 2102212464, %v198
    %v208 = vor.u32 %v206, %v207
    %v209 = vshll.u32 2102212464, %v197
    %v210 = vshrl.u32 920167782, %v198
    %v211 = vor.u32 %v209, %v210
    %v212 = vshll.u32 920167782, %v197
    %v213 = vshrl.u32 1326507024, %v198
    %v214 = vor.u32 %v212, %v213
    %vm215 = vcmp.lt.s32.totalorder %v196, 1
    %vm216 = vcmp.lt.s32.totalorder %v196, 2
    %vm217 = vcmp.lt.s32.totalorder %v196, 3
    %vm218 = vcmp.lt.s32.totalorder %v196, 4
    %v219 = vsel %vm215, %v199, %v202
    %v220 = vsel %vm218, %v208, 2102212464
    %v221 = vsel %vm217, %v205, %v220
    %v222 = vsel %vm216, %v219, %v221
    %v223 = vsel %vm215, %v202, %v205
    %v224 = vsel %vm218, %v211, 920167782
    %v225 = vsel %vm217, %v208, %v224
    %v226 = vsel %vm216, %v223, %v225
    %v227 = vsel %vm215, %v205, %v208
    %v228 = vsel %vm218, %v214, 1326507024
    %v229 = vsel %vm217, %v211, %v228
    %v230 = vsel %vm216, %v227, %v229
    %v231 = vshll.u32 %v191, 8
    %v232 = vand.u32 %v231, 65535
    %v233 = vshrl.u32 %v231, 16
    %v234 = vand.u32 %v230, 65535
    %v235 = vshrl.u32 %v230, 16
    %v236 = vmul.u32 %v232, %v234
    %v237 = vmul.u32 %v232, %v235
    %v238 = vmul.u32 %v233, %v234
    %v239 = vmul.u32 %v233, %v235
    %v240 = vshll.u32 %v237, 16
    %v241 = vshrl.u32 %v237, 16
    %v242 = vshll.u32 %v238, 16
    %v243 = vshrl.u32 %v238, 16
    %vm244 = vc.u32 %v236, %v240
    %v245 = vsel %vm244, 1, 0
    %v246 = vadd.s32 %v236, %v240
    %v247 = vadd.s32 %v239, %v245
    %vm248 = vc.u32 %v246, %v242
    %v249 = vsel %vm248, 1, 0
    %v250 = vadd.s32 %v246, %v242
    %v251 = vadd.s32 %v247, %v249
    %v252 = vadd.s32 %v251, %v241
    %v253 = vadd.s32 %v252, %v243
    %v254 = vand.u32 %v231, 65535
    %v255 = vshrl.u32 %v231, 16
    %v256 = vand.u32 %v226, 65535
    %v257 = vshrl.u32 %v226, 16
    %v258 = vmul.u32 %v254, %v256
    %v259 = vmul.u32 %v254, %v257
    %v260 = vmul.u32 %v255, %v256
    %v261 = vmul.u32 %v255, %v257
    %v262 = vshll.u32 %v259, 16
    %v263 = vshrl.u32 %v259, 16
    %v264 = vshll.u32 %v260, 16
    %v265 = vshrl.u32 %v260, 16
    %vm266 = vc.u32 %v258, %v262
    %v267 = vsel %vm266, 1, 0
    %v268 = vadd.s32 %v258, %v262
    %v269 = vadd.s32 %v261, %v267
    %vm270 = vc.u32 %v268, %v264
    %v271 = vsel %vm270, 1, 0
    %v272 = vadd.s32 %v268, %v264
    %v273 = vadd.s32 %v269, %v271
    %v274 = vadd.s32 %v273, %v263
    %v275 = vadd.s32 %v274, %v265
    %v276 = vmul.u32 %v231, %v222
    %v277 = vadd.s32 %v253, %v272
    %vm278 = vc.u32 %v253, %v272
    %v279 = vadd.s32 %v275, 1
    %v280 = vsel %vm278, %v279, %v275
    %v281 = vadd.s32 %v276, %v280
    %v282 = vadd.s32 %v281, 536870912
    %v283 = vshrl.u32 %v282, 30
    %v284 = vshll.u32 %v283, 30
    %v285 = vsub.s32 %v281, %v284
    %vm286 = vcmp.lt.s32.totalorder %v285, 0
    %v287 = vsub.s32 0, %v285
    %v288 = vsel %vm286, %v287, %v285
    %v289 = vclz %v288
    %v290 = vsub.s32 %v289, 2
    %vm291 = vcmp.gt.s32.totalorder 0, %v290
    %v292 = vsel %vm291, 0, %v290
    %v293 = vsub.s32 32, %v292
    %v294 = vshll.u32 %v285, %v292
    %v295 = vshrl.u32 %v277, %v293
    %v296 = vor.u32 %v294, %v295
    %v297 = vsub.s32 4294967266, %v292
    %v298 = vadd.s32 %v297, 127
    %v299 = vshll.u32 %v298, 23
    %v300 = vor.u32 4788187, %v299
    %v301 = vand.u32 2147483647, %v300
    %v303 = vcvt.s32.f32 %v296
    %v304 = vmul.f32 %v303, %v301
    %v305 = vxor.u32 %v304, 2147483648
    %v306 = vsel %vm185, %v305, %v304
    %v307 = vsub.s32 4, %v283
    %v308 = vsel %vm185, %v307, %v283
    %v309 = vsel %vm184, %v23, %v306
    %v310 = vsel %vm184, 0, %v308
    %v311 = vmul.f32 %v309, %v309
    %v312 = vmul.f32 %v311, -0.001358992
    %v313 = vadd.f32 %v312, 0.041655596
    %v314 = vmul.f32 %v311, %v313
    %v315 = vadd.f32 %v314, -0.4999988
    %v316 = vmul.f32 %v311, %v315
    %v317 = vadd.f32 1.0, %v316
    %v318 = vmul.f32 %v309, %v309
    %v319 = vmul.f32 %v318, -0.00019511016
    %v320 = vadd.f32 %v319, 0.008332121
    %v321 = vmul.f32 %v318, %v320
    %v322 = vadd.f32 %v321, -0.16666654
    %v323 = vmul.f32 %v318, %v322
    %v324 = vadd.f32 %v323, 1.0
    %v325 = vmul.f32 %v324, %v309
    %vm326 = vweird.f32 %v23
    %v327 = vand.u32 %v310, 3
    %vm328 = vcmp.lt.s32.totalorder %v327, 2
    %vm329 = vcmp.eq.s32.totalorder %v327, 0
    %v330 = vxor.u32 %v325, 2147483648
    %v331 = vsel %vm329, %v317, %v330
    %vm332 = vcmp.eq.s32.totalorder %v327, 2
    %v333 = vxor.u32 %v317, 2147483648
    %v334 = vsel %vm332, %v333, %v325
    %v335 = vsel %vm328, %v331, %v334
    %v336 = vsel %vm326, nan, %v335
    %337 = vst [vmem:[%s181 + $0x8] sm:$0xff] %v336
    // Predicated region
    $region10: #{tpu_custom_call.1} parent=1 // pred_check
      _
    $region11: #{tpu_custom_call.1} parent=1 // pred_check_branch
      %339 = sbr.rel (0) target = $region13
    $region12: #{tpu_custom_call.1} parent=1 // pred_region
      %341 = vsyncadd [#allocation3], 0
      %s343 = sshll.u32 [#allocation2], 4
      %s344 = int_to_ptr.vmem [resolvable:$true] %s343
      %s345 = sshll.u32 %s2, 4
      %s346 = int_to_ptr.hbm [resolvable:$true] %s345
      %348 = dma.vmem_to_hbm [thread:$0]  %s344, 256, %s346, [#allocation3]
    $region13: #{tpu_custom_call.1} parent=1 // pred_fallthru
      _
    // Predicated region
    $region14: #{tpu_custom_call.1} parent=1 // pred_check
      _
    $region15: #{tpu_custom_call.1} parent=1 // pred_check_branch
      %350 = sbr.rel (0) target = $region17
    $region16: #{tpu_custom_call.1} parent=1 // pred_region
      %352 = dma.done [#allocation3], 256
    $region17: #{tpu_custom_call.1} parent=1 // pred_fallthru
      _
    %353 = vsyncpa [#allocation3], 1

</llo_original>
